<compile_context>
chip_gen: v7x
topology: tpu7x:2x2x1
jax: 0.10.0
libtpu: 0.0.40
codegen_flags: <defaults>
</compile_context>

<pallas_src>
from functools import partial

import jax
import jax.numpy as jnp
from jax import lax
from jax.experimental import pallas as pl
from jax.experimental.pallas import tpu as pltpu


def _mbd_kernel(x_ref, t_ref, sel_ref, out_ref, *, n, in_features,
                out_features, kernel_dims, calc_mean):
    """Minibatch-discrimination forward (fused with the final concat).

    x_ref   : [N, F_in]          input features
    t_ref   : [F_in, B*C]        flattened t_mat (torch .view layout)
    sel_ref : [B, B*C]           lane-dense 0/1 block-sum selector
    out_ref : [N, F_in + B]      concat([x, o_b], axis=1)
    """
    x = x_ref[...]                                   # f32 already, no cast
    t = t_ref[...]
    sel = sel_ref[...]                               # [B, B*C] lane-dense

    bc = out_features * kernel_dims

    # out = x.mm(t_mat.view(in_features, -1))  -> m: [N, B*C]
    m = jnp.dot(x, t, preferred_element_type=jnp.float32)

    # Batched pairwise |diff|: one MXU call instead of N unrolled ones.
    # diff[i, j, :] = |m[i] - m[j]|  (symmetric, so sum over either i or j).
    diff = jnp.abs(m[:, None, :] - m[None, :, :])             # [N, N, B*C]
    diff2d = diff.reshape(n * n, bc)                           # sublane-only reshape

    # Segment-sum over the C axis as a matmul contracting the LAST dims:
    # norm[p, b] = sum_k diff2d[p, k] * sel[b, k]   -> [N*N, B]
    norm = lax.dot_general(diff2d, sel,
                           dimension_numbers=(((1,), (1,)), ((), ())),
                           preferred_element_type=jnp.float32)

    exp_norm = jnp.exp(-norm).reshape(n, n, out_features)      # [N, N, B]
    # Self term i==j contributes exp(0)=1, cancelled exactly by the -1.0.
    o_b = exp_norm.sum(axis=0) - 1.0                           # [N, B]
    if calc_mean:
        # Matches torch's `o_b /= (n - 1)` to within ~1 ulp (multiply by a
        # precomputed reciprocal instead of dividing); requires n >= 2.
        o_b = o_b * jnp.float32(1.0 / (n - 1))

    # Fused torch.cat([x, o_b], dim=1) as two static-slice sub-stores:
    # avoids the lane-axis concatenate's in-register shuffle.
    out_ref[:, :in_features] = x.astype(out_ref.dtype)
    out_ref[:, in_features:] = o_b.astype(out_ref.dtype)


def minibatch_discrimination(x, t_mat, *, calc_mean=False):
    """Pallas-backed forward pass of MinibatchDiscrimination.

    x     : [N, in_features]                            float32
    t_mat : [in_features, out_features, kernel_dims]    float32
    returns [N, in_features + out_features]
    """
    n, in_features = x.shape
    in_f2, out_features, kernel_dims = t_mat.shape
    assert in_f2 == in_features
    if calc_mean:
        # torch module divides by (n - 1); n == 1 would divide by zero.
        assert n >= 2, "calc_mean=True requires batch size >= 2"

    bc = out_features * kernel_dims
    # Glue: flatten t_mat exactly like torch's .view(in_features, -1).
    t_flat = t_mat.reshape(in_features, bc)

    # Lane-dense block-sum selector: sel[b, b*C + c] = 1.
    col_ids = lax.broadcasted_iota(jnp.int32, (out_features, bc), 1)
    row_ids = lax.broadcasted_iota(jnp.int32, (out_features, bc), 0)
    sel = (col_ids // kernel_dims == row_ids).astype(jnp.float32)

    cost = pl.CostEstimate(
        flops=2 * n * in_features * bc + 2 * n * n * bc * out_features,
        transcendentals=n * n * out_features,
        bytes_accessed=4 * (n * in_features + in_features * bc
                            + out_features * bc
                            + n * (in_features + out_features)),
    )

    # Intentionally gridless: whole-array blocks are correct and fastest at
    # these shapes (single VMEM block, latency-bound).  See scale-up notes at
    # the top of the file before adding a grid.
    out = pl.pallas_call(
        partial(_mbd_kernel, n=n, in_features=in_features,
                out_features=out_features, kernel_dims=kernel_dims,
                calc_mean=calc_mean),
        out_shape=jax.ShapeDtypeStruct((n, in_features + out_features),
                                       jnp.float32),
        in_specs=[
            pl.BlockSpec(memory_space=pltpu.MemorySpace.VMEM),
            pl.BlockSpec(memory_space=pltpu.MemorySpace.VMEM),
            pl.BlockSpec(memory_space=pltpu.MemorySpace.VMEM),
        ],
        out_specs=pl.BlockSpec(memory_space=pltpu.MemorySpace.VMEM),
        cost_estimate=cost,
    )(x, t_flat, sel)
    return out


def _reference(x, t_mat, calc_mean=False):
    """Pure-JAX reference mirroring the PyTorch forward."""
    n, in_f = x.shape
    _, b, c = t_mat.shape
    out = x @ t_mat.reshape(in_f, -1)
    out = out.reshape(-1, b, c)
    out0 = out[None, :, :, :]           # [1, N, B, C]
    out1 = out[:, None, :, :]           # [N, 1, B, C]
    norm = jnp.abs(out0 - out1).sum(3)  # [N, N, B]
    exp_norm = jnp.exp(-norm)
    o_b = exp_norm.sum(0) - 1.0
    if calc_mean:
        o_b = o_b / (n - 1)
    return jnp.concatenate([x, o_b], axis=1)


if __name__ == "__main__":
    # Module config (deterministic, synthetic): in_features=32, out_features=16,
    # kernel_dims=16, calc_mean=False (the nn.Module defaults).
    N, IN_FEATURES, OUT_FEATURES, KERNEL_DIMS = 8, 32, 16, 16

    key = jax.random.PRNGKey(0)
    kx, kt = jax.random.split(key)
    x = jax.random.normal(kx, (N, IN_FEATURES), dtype=jnp.float32)
    # t_mat ~ Normal(0, 1), shape (in_features, out_features, kernel_dims)
    t_mat = jax.random.normal(kt, (IN_FEATURES, OUT_FEATURES, KERNEL_DIMS),
                              dtype=jnp.float32)

    out = minibatch_discrimination(x, t_mat, calc_mean=False)
    out = jax.block_until_ready(out)

    ref = _reference(x, t_mat, calc_mean=False)
    assert out.shape == (N, IN_FEATURES + OUT_FEATURES)
    assert jnp.allclose(out, ref, rtol=1e-5, atol=1e-5)

    print("KERNEL_OK")
</pallas_src>

<mosaic_0001>
module attributes {stable_mosaic.version = 11 : i64} {
  func.func @_mbd_kernel(%arg0: memref<8x32xf32, #tpu.memory_space<vmem>>, %arg1: memref<32x256xf32, #tpu.memory_space<vmem>>, %arg2: memref<16x256xf32, #tpu.memory_space<vmem>>, %arg3: memref<8x48xf32, #tpu.memory_space<vmem>>) attributes {dimension_semantics = [], scalar_prefetch = 0 : i64, scratch_operands = 0 : i64, tpu.core_type = #tpu.core_type<tc>} {
    %c0 = arith.constant 0 : index
    %c0_0 = arith.constant 0 : index
    %0 = vector.load %arg0[%c0, %c0_0] : memref<8x32xf32, #tpu.memory_space<vmem>>, vector<8x32xf32>
    %c0_1 = arith.constant 0 : index
    %c0_2 = arith.constant 0 : index
    %1 = vector.load %arg1[%c0_1, %c0_2] : memref<32x256xf32, #tpu.memory_space<vmem>>, vector<32x256xf32>
    %c0_3 = arith.constant 0 : index
    %c0_4 = arith.constant 0 : index
    %2 = vector.load %arg2[%c0_3, %c0_4] : memref<16x256xf32, #tpu.memory_space<vmem>>, vector<16x256xf32>
    %cst = arith.constant dense<0.000000e+00> : vector<8x256xf32>
    %3 = tpu.matmul %0, %1, %cst {dimension_numbers = #tpu.dot_dimension_numbers<[1], [0], [0], [1], [0, 0, 1, 1], [], []>} : vector<8x32xf32>, vector<32x256xf32>, vector<8x256xf32> -> vector<8x256xf32>
    %4 = vector.shape_cast %3 : vector<8x256xf32> to vector<8x1x256xf32>
    %5 = vector.shape_cast %3 : vector<8x256xf32> to vector<1x8x256xf32>
    %6 = vector.broadcast %4 : vector<8x1x256xf32> to vector<8x8x256xf32>
    %7 = vector.broadcast %5 : vector<1x8x256xf32> to vector<8x8x256xf32>
    %8 = arith.subf %6, %7 : vector<8x8x256xf32>
    %9 = math.absf %8 : vector<8x8x256xf32>
    %10 = vector.shape_cast %9 : vector<8x8x256xf32> to vector<64x256xf32>
    %cst_5 = arith.constant dense<0.000000e+00> : vector<64x16xf32>
    %11 = tpu.matmul %10, %2, %cst_5 {dimension_numbers = #tpu.dot_dimension_numbers<[1], [1], [0], [0], [0, 0, 1, 0], [], []>} : vector<64x256xf32>, vector<16x256xf32>, vector<64x16xf32> -> vector<64x16xf32>
    %cst_6 = arith.constant 0.000000e+00 : f32
    %12 = vector.broadcast %cst_6 : f32 to vector<64x16xf32>
    %13 = arith.subf %12, %11 : vector<64x16xf32>
    %14 = math.exp %13 : vector<64x16xf32>
    %15 = vector.shape_cast %14 : vector<64x16xf32> to vector<8x8x16xf32>
    %cst_7 = arith.constant dense<0.000000e+00> : vector<8x16xf32>
    %16 = vector.multi_reduction <add>, %15, %cst_7 [0] : vector<8x8x16xf32> to vector<8x16xf32>
    %cst_8 = arith.constant 1.000000e+00 : f32
    %17 = vector.broadcast %cst_8 : f32 to vector<8x16xf32>
    %18 = arith.subf %16, %17 : vector<8x16xf32>
    %c0_9 = arith.constant 0 : index
    %c0_10 = arith.constant 0 : index
    %19 = vector.load %arg3[%c0_9, %c0_10] : memref<8x48xf32, #tpu.memory_space<vmem>>, vector<8x32xf32>
    tpu.vector_store %arg3[%c0_9, %c0_10], %0 {strides = array<i32>} : memref<8x48xf32, #tpu.memory_space<vmem>>, vector<8x32xf32>,
    %c0_11 = arith.constant 0 : index
    %c32 = arith.constant 32 : index
    %20 = vector.load %arg3[%c0_11, %c32] : memref<8x48xf32, #tpu.memory_space<vmem>>, vector<8x16xf32>
    tpu.vector_store %arg3[%c0_11, %c32], %18 {strides = array<i32>} : memref<8x48xf32, #tpu.memory_space<vmem>>, vector<8x16xf32>,
    return
  }
}

</mosaic_0001>

<llo_original>
// kernel: tpu_custom_call.1
$region0: #{tpu_custom_call.1}
  #allocation0 [shape = 'u32[]', space=smem, size = 0x4, offset = 0x4, fixed_abs, tag = 'smem constant byte address 0x4 - core index']
  #allocation1 [shape = 'u32[144,128]{1,0:T(1,128)}', space=vmem, size = 0x12000, scoped, tag = 'internal scratch']
  %s0 = inlined_call_operand.hbm [shape: f32[8,32], index: 0, kind: input, shape index: {}]
  %s1 = inlined_call_operand.hbm [shape: f32[32,256], index: 1, kind: input, shape index: {}]
  %s2 = inlined_call_operand.hbm [shape: f32[16,256], index: 2, kind: input, shape index: {}]
  %s3 = inlined_call_operand.hbm [shape: f32[8,48], index: 3, kind: output, shape index: {}]
  %s4 = sld [smem:[#allocation0]]
  $region34: #{tpu_custom_call.1} parent=0
    _
  %s6 = ssub.s32 1, %s4
  %s7 = scalar_select 0, %s6, %s4
  $region1: #{tpu_custom_call.1} parent=0
    #allocation2 [shape = 'u8[4096]{0}', space=vmem, size = 0x1000, scoped, tag = 'input window, operand 0, single buffered']
    #allocation3 [shape = 's32[1]{0}', space=sflag, size = 0x4, scoped, tag = 'scoped memory for tpu_custom_call.1']
    #allocation4 [shape = 's32[1]{0}', space=sflag, size = 0x4, scoped, tag = 'scoped memory for tpu_custom_call.1']
    #allocation5 [shape = 'u8[32768]{0}', space=vmem, size = 0x8000, scoped, tag = 'input window, operand 1, single buffered']
    #allocation6 [shape = 's32[1]{0}', space=sflag, size = 0x4, scoped, tag = 'scoped memory for tpu_custom_call.1']
    #allocation7 [shape = 'u8[16384]{0}', space=vmem, size = 0x4000, scoped, tag = 'input window, operand 2, single buffered']
    #allocation8 [shape = 'u8[4096]{0}', space=vmem, size = 0x1000, scoped, tag = 'output window, operand 0, single buffered']
    %8 = vsyncpa [#allocation3], 0
    %9 = vsyncpa [#allocation6], 0
    %10 = vsyncpa [#allocation4], 0
    // Predicated region
    $region2: #{tpu_custom_call.1} parent=1 // pred_check
      _
    $region3: #{tpu_custom_call.1} parent=1 // pred_check_branch
      %12 = sbr.rel (0) target = $region5
    $region4: #{tpu_custom_call.1} parent=1 // pred_region
      %s14 = ssub.s32 128, 128
      %15 = vsyncadd [#allocation3], %s14
      %s17 = sshll.u32 [#allocation2], 4
      %s18 = int_to_ptr.vmem [resolvable:$true] %s17
      %20 = dma.hbm_to_vmem [thread:$0]  %s0, 128, %s18, [#allocation3]
    $region5: #{tpu_custom_call.1} parent=1 // pred_fallthru
      _
    // Predicated region
    $region6: #{tpu_custom_call.1} parent=1 // pred_check
      _
    $region7: #{tpu_custom_call.1} parent=1 // pred_check_branch
      %22 = sbr.rel (0) target = $region9
    $region8: #{tpu_custom_call.1} parent=1 // pred_region
      %s24 = ssub.s32 1024, 1024
      %25 = vsyncadd [#allocation6], %s24
      %s26 = sshll.u32 [#allocation5], 4
      %s27 = int_to_ptr.vmem [resolvable:$true] %s26
      %32 = dma.hbm_to_vmem [thread:$0]  %s1, 1024, %s27, [#allocation6], 256, 256, 16
    $region9: #{tpu_custom_call.1} parent=1 // pred_fallthru
      _
    // Predicated region
    $region10: #{tpu_custom_call.1} parent=1 // pred_check
      _
    $region11: #{tpu_custom_call.1} parent=1 // pred_check_branch
      %34 = sbr.rel (0) target = $region13
    $region12: #{tpu_custom_call.1} parent=1 // pred_region
      %s36 = ssub.s32 512, 512
      %37 = vsyncadd [#allocation6], %s36
      %s38 = sshll.u32 [#allocation7], 4
      %s39 = int_to_ptr.vmem [resolvable:$true] %s38
      %44 = dma.hbm_to_vmem [thread:$0]  %s2, 512, %s39, [#allocation6], 256, 256, 16
    $region13: #{tpu_custom_call.1} parent=1 // pred_fallthru
      _
    // Predicated region
    $region14: #{tpu_custom_call.1} parent=1 // pred_check
      _
    $region15: #{tpu_custom_call.1} parent=1 // pred_check_branch
      %46 = sbr.rel (0) target = $region17
    $region16: #{tpu_custom_call.1} parent=1 // pred_region
      %47 = dma.done [#allocation3], 128
    $region17: #{tpu_custom_call.1} parent=1 // pred_fallthru
      _
    // Predicated region
    $region18: #{tpu_custom_call.1} parent=1 // pred_check
      _
    $region19: #{tpu_custom_call.1} parent=1 // pred_check_branch
      %49 = sbr.rel (0) target = $region21
    $region20: #{tpu_custom_call.1} parent=1 // pred_region
      %50 = dma.done [#allocation6], 1024
    $region21: #{tpu_custom_call.1} parent=1 // pred_fallthru
      _
    // Predicated region
    $region22: #{tpu_custom_call.1} parent=1 // pred_check
      _
    $region23: #{tpu_custom_call.1} parent=1 // pred_check_branch
      %52 = sbr.rel (0) target = $region25
    $region24: #{tpu_custom_call.1} parent=1 // pred_region
      %53 = dma.done [#allocation6], 512
    $region25: #{tpu_custom_call.1} parent=1 // pred_fallthru
      _
    %v54 = vld [vmem:[#allocation2] sm:$0xff]
    %v55 = vld [vmem:[#allocation5] sm:$0xff]
    %v56 = vld [vmem:[#allocation5 + $0x8] sm:$0xff]
    %v57 = vld [vmem:[#allocation5 + $0x10] sm:$0xff]
    %v58 = vld [vmem:[#allocation5 + $0x18] sm:$0xff]
    %v59 = vld [vmem:[#allocation5 + $0x20] sm:$0xff]
    %v60 = vld [vmem:[#allocation5 + $0x28] sm:$0xff]
    %v61 = vld [vmem:[#allocation5 + $0x30] sm:$0xff]
    %v62 = vld [vmem:[#allocation5 + $0x38] sm:$0xff]
    %v63 = vld [vmem:[#allocation7] sm:$0xff]
    %v64 = vld [vmem:[#allocation7 + $0x8] sm:$0xff]
    %v65 = vld [vmem:[#allocation7 + $0x10] sm:$0xff]
    %v66 = vld [vmem:[#allocation7 + $0x18] sm:$0xff]
    %vm67 = vcmask 261120
    %v69 = vsel %vm67, %v54, 0
    %71 = vmatprep.subr.mxu0 %v56
    %72 = vmatpush1.msra.mxu0 %v55
    %73 = vmatprep.subr.mxu0 %v58
    %74 = vmatpush1.msra.mxu0 %v57
    %75 = vmatprep.subr.mxu0 %v60
    %76 = vmatpush1.msra.mxu0 %v59
    %77 = vmatprep.subr.mxu0 %v62
    %78 = vmatpush1.msra.mxu0 %v61
    %79 = vmatprep.subr.mxu0 0.0
    %80 = vmatpush1.msra.mxu0 0.0
    %81 = vmatprep.subr.mxu0 0.0
    %82 = vmatpush1.msra.mxu0 0.0
    %83 = vmatprep.subr.mxu0 0.0
    %84 = vmatpush1.msra.mxu0 0.0
    %85 = vmatprep.subr.mxu0 0.0
    %86 = vmatpush1.msra.mxu0 0.0
    %87 = vmatprep.subr.mxu0 0.0
    %88 = vmatpush1.msra.mxu0 0.0
    %89 = vmatprep.subr.mxu0 0.0
    %90 = vmatpush1.msra.mxu0 0.0
    %91 = vmatprep.subr.mxu0 0.0
    %92 = vmatpush1.msra.mxu0 0.0
    %93 = vmatprep.subr.mxu0 0.0
    %94 = vmatpush1.msra.mxu0 0.0
    %95 = vmatprep.subr.mxu0 0.0
    %96 = vmatpush1.msra.mxu0 0.0
    %97 = vmatprep.subr.mxu0 0.0
    %98 = vmatpush1.msra.mxu0 0.0
    %99 = vmatprep.subr.mxu0 0.0
    %100 = vmatpush1.msra.mxu0 0.0
    %101 = vmatprep.subr.mxu0 0.0
    %102 = vmatpush1.msra.mxu0 0.0
    %103 = vmatprep.subr.mxu0 0.0
    %104 = vmatpush1.msra.mxu0 0.0
    %105 = vmatprep.subr.mxu0 0.0
    %106 = vmatpush1.msra.mxu0 0.0
    %107 = vmatprep.subr.mxu0 0.0
    %108 = vmatpush1.msra.mxu0 0.0
    %109 = vmatprep.subr.mxu0 0.0
    %110 = vmatpush1.msra.mxu0 0.0
    %111 = vmatprep.subr.mxu0 0.0
    %112 = vmatpush1.msra.mxu0 0.0
    %113 = vmatprep.subr.mxu0 0.0
    %114 = vmatpush1.msra.mxu0 0.0
    %115 = vmatprep.subr.mxu0 0.0
    %116 = vmatpush1.msra.mxu0 0.0
    %117 = vmatprep.subr.mxu0 0.0
    %118 = vmatpush1.msra.mxu0 0.0
    %119 = vmatprep.subr.mxu0 0.0
    %120 = vmatpush1.msra.mxu0 0.0
    %121 = vmatprep.subr.mxu0 0.0
    %122 = vmatpush1.msra.mxu0 0.0
    %123 = vmatprep.subr.mxu0 0.0
    %124 = vmatpush1.msra.mxu0 0.0
    %125 = vmatprep.subr.mxu0 0.0
    %126 = vmatpush1.msra.mxu0 0.0
    %127 = vmatprep.subr.mxu0 0.0
    %128 = vmatpush1.msra.mxu0 0.0
    %129 = vmatprep.subr.mxu0 0.0
    %130 = vmatpush1.msra.mxu0 0.0
    %131 = vmatprep.subr.mxu0 0.0
    %132 = vmatpush1.msra.mxu0 0.0
    %133 = vmatprep.subr.mxu0 0.0
    %134 = vmatpush1.msra.mxu0 0.0
    %135 = vmatprep.mubr.f32.mxu0 0.0
    %136 = vmatmul.mubr.f32.gmra.mrb[0].mxu0 %v69
    %v137 = vpop.f32.mrb[0].mxu0
    %v138 = vadd.f32 0.0, %v137
    %v139 = vpop.f32.mrb[0].mxu0
    %v140 = vadd.f32 0.0, %v139
    %141 = vdwg.mxu0
    %v144 = vcombine.low %v138, %v140
    %v145 = vcombine.high %v138, %v140
    %v147 = vunpack.c.l.s4 1966171168
    %v148 = vunpack.c.0.s8 %v147
    %v149 = vlaneseq
    %v150 = vshrl.u32 %v149, 7
    %v151 = vsub.s32 %v148, %v150
    %v152 = vrot.slane %v144, %v151
    %v154 = vunpack.c.l.s4 1966171168
    %v155 = vunpack.c.0.s8 %v154
    %v156 = vlaneseq
    %v157 = vshrl.u32 %v156, 7
    %v158 = vsub.s32 %v155, %v157
    %v159 = vrot.slane %v145, %v158
    %v160 = vcombine.high %v152, %v152
    %v161 = vcombine.high %v159, %v159
    %v163 = vunpack.c.l.s4 1966171168
    %v164 = vunpack.c.0.s8 %v163
    %v165 = vlaneseq
    %v166 = vshrl.u32 %v165, 7
    %v167 = vsub.s32 %v164, %v166
    %v168 = vrot.slane %v152, %v167
    %v170 = vunpack.c.l.s4 1966171168
    %v171 = vunpack.c.0.s8 %v170
    %v172 = vlaneseq
    %v173 = vshrl.u32 %v172, 7
    %v174 = vsub.s32 %v171, %v173
    %v175 = vrot.slane %v159, %v174
    %v177 = vunpack.c.l.s4 1966171168
    %v178 = vunpack.c.0.s8 %v177
    %v179 = vlaneseq
    %v180 = vshrl.u32 %v179, 7
    %v181 = vsub.s32 %v178, %v180
    %v182 = vrot.slane %v160, %v181
    %v184 = vunpack.c.l.s4 1966171168
    %v185 = vunpack.c.0.s8 %v184
    %v186 = vlaneseq
    %v187 = vshrl.u32 %v186, 7
    %v188 = vsub.s32 %v185, %v187
    %v189 = vrot.slane %v161, %v188
    %v190 = vcombine.high %v168, %v168
    %v191 = vcombine.high %v175, %v175
    %v192 = vcombine.high %v182, %v182
    %v193 = vcombine.high %v189, %v189
    %v194 = vlaneseq
    %v195 = vshrl.u32 %v194, 7
    %v196 = vsub.s32 0, %v195
    %v197 = vrot.slane %v168, %v196
    %v198 = vlaneseq
    %v199 = vshrl.u32 %v198, 7
    %v200 = vsub.s32 1, %v199
    %v201 = vrot.slane %v168, %v200
    %v202 = vlaneseq
    %v203 = vshrl.u32 %v202, 7
    %v204 = vsub.s32 0, %v203
    %v205 = vrot.slane %v182, %v204
    %v206 = vlaneseq
    %v207 = vshrl.u32 %v206, 7
    %v208 = vsub.s32 1, %v207
    %v209 = vrot.slane %v182, %v208
    %v210 = vlaneseq
    %v211 = vshrl.u32 %v210, 7
    %v212 = vsub.s32 0, %v211
    %v213 = vrot.slane %v190, %v212
    %v214 = vlaneseq
    %v215 = vshrl.u32 %v214, 7
    %v216 = vsub.s32 1, %v215
    %v217 = vrot.slane %v190, %v216
    %v218 = vlaneseq
    %v219 = vshrl.u32 %v218, 7
    %v220 = vsub.s32 0, %v219
    %v221 = vrot.slane %v192, %v220
    %v222 = vlaneseq
    %v223 = vshrl.u32 %v222, 7
    %v224 = vsub.s32 1, %v223
    %v225 = vrot.slane %v192, %v224
    %v226 = vlaneseq
    %v227 = vshrl.u32 %v226, 7
    %v228 = vsub.s32 0, %v227
    %v229 = vrot.slane %v175, %v228
    %v230 = vlaneseq
    %v231 = vshrl.u32 %v230, 7
    %v232 = vsub.s32 1, %v231
    %v233 = vrot.slane %v175, %v232
    %v234 = vlaneseq
    %v235 = vshrl.u32 %v234, 7
    %v236 = vsub.s32 0, %v235
    %v237 = vrot.slane %v189, %v236
    %v238 = vlaneseq
    %v239 = vshrl.u32 %v238, 7
    %v240 = vsub.s32 1, %v239
    %v241 = vrot.slane %v189, %v240
    %v242 = vlaneseq
    %v243 = vshrl.u32 %v242, 7
    %v244 = vsub.s32 0, %v243
    %v245 = vrot.slane %v191, %v244
    %v246 = vlaneseq
    %v247 = vshrl.u32 %v246, 7
    %v248 = vsub.s32 1, %v247
    %v249 = vrot.slane %v191, %v248
    %v250 = vlaneseq
    %v251 = vshrl.u32 %v250, 7
    %v252 = vsub.s32 0, %v251
    %v253 = vrot.slane %v193, %v252
    %v254 = vlaneseq
    %v255 = vshrl.u32 %v254, 7
    %v256 = vsub.s32 1, %v255
    %v257 = vrot.slane %v193, %v256
    %v274 = vsub.f32 %v197, %v138
    %v275 = vsub.f32 %v201, %v140
    %v276 = vsub.f32 %v205, %v138
    %v277 = vsub.f32 %v209, %v140
    %v278 = vsub.f32 %v213, %v138
    %v279 = vsub.f32 %v217, %v140
    %v280 = vsub.f32 %v221, %v138
    %v281 = vsub.f32 %v225, %v140
    %v282 = vsub.f32 %v229, %v138
    %v283 = vsub.f32 %v233, %v140
    %v284 = vsub.f32 %v237, %v138
    %v285 = vsub.f32 %v241, %v140
    %v286 = vsub.f32 %v245, %v138
    %v287 = vsub.f32 %v249, %v140
    %v288 = vsub.f32 %v253, %v138
    %v289 = vsub.f32 %v257, %v140
    %v290 = vand.u32 2147483647, %v274
    %v291 = vand.u32 2147483647, %v275
    %v292 = vand.u32 2147483647, %v276
    %v293 = vand.u32 2147483647, %v277
    %v294 = vand.u32 2147483647, %v278
    %v295 = vand.u32 2147483647, %v279
    %v296 = vand.u32 2147483647, %v280
    %v297 = vand.u32 2147483647, %v281
    %v298 = vand.u32 2147483647, %v282
    %v299 = vand.u32 2147483647, %v283
    %v300 = vand.u32 2147483647, %v284
    %v301 = vand.u32 2147483647, %v285
    %v302 = vand.u32 2147483647, %v286
    %v303 = vand.u32 2147483647, %v287
    %v304 = vand.u32 2147483647, %v288
    %v305 = vand.u32 2147483647, %v289
    %306 = vmatprep.subr.mxu0 %v64
    %307 = vmatpush1.xpose.msra.mxu0 %v63
    %308 = vmatprep.subr.mxu0 %v66
    %309 = vmatpush1.xpose.msra.mxu0 %v65
    %310 = vmatprep.subr.mxu0 0.0
    %311 = vmatpush1.xpose.msra.mxu0 0.0
    %312 = vmatprep.subr.mxu0 0.0
    %313 = vmatpush1.xpose.msra.mxu0 0.0
    %314 = vmatprep.subr.mxu0 0.0
    %315 = vmatpush1.xpose.msra.mxu0 0.0
    %316 = vmatprep.subr.mxu0 0.0
    %317 = vmatpush1.xpose.msra.mxu0 0.0
    %318 = vmatprep.subr.mxu0 0.0
    %319 = vmatpush1.xpose.msra.mxu0 0.0
    %320 = vmatprep.subr.mxu0 0.0
    %321 = vmatpush1.xpose.msra.mxu0 0.0
    %322 = vmatprep.subr.mxu0 0.0
    %323 = vmatpush1.xpose.msra.mxu0 0.0
    %324 = vmatprep.subr.mxu0 0.0
    %325 = vmatpush1.xpose.msra.mxu0 0.0
    %326 = vmatprep.subr.mxu0 0.0
    %327 = vmatpush1.xpose.msra.mxu0 0.0
    %328 = vmatprep.subr.mxu0 0.0
    %329 = vmatpush1.xpose.msra.mxu0 0.0
    %330 = vmatprep.subr.mxu0 0.0
    %331 = vmatpush1.xpose.msra.mxu0 0.0
    %332 = vmatprep.subr.mxu0 0.0
    %333 = vmatpush1.xpose.msra.mxu0 0.0
    %334 = vmatprep.subr.mxu0 0.0
    %335 = vmatpush1.xpose.msra.mxu0 0.0
    %336 = vmatprep.subr.mxu0 0.0
    %337 = vmatpush1.xpose.msra.mxu0 0.0
    %338 = vmatprep.subr.mxu0 0.0
    %339 = vmatpush1.xpose.msra.mxu0 0.0
    %340 = vmatprep.subr.mxu0 0.0
    %341 = vmatpush1.xpose.msra.mxu0 0.0
    %342 = vmatprep.subr.mxu0 0.0
    %343 = vmatpush1.xpose.msra.mxu0 0.0
    %344 = vmatprep.subr.mxu0 0.0
    %345 = vmatpush1.xpose.msra.mxu0 0.0
    %346 = vmatprep.subr.mxu0 0.0
    %347 = vmatpush1.xpose.msra.mxu0 0.0
    %348 = vmatprep.subr.mxu0 0.0
    %349 = vmatpush1.xpose.msra.mxu0 0.0
    %350 = vmatprep.subr.mxu0 0.0
    %351 = vmatpush1.xpose.msra.mxu0 0.0
    %352 = vmatprep.subr.mxu0 0.0
    %353 = vmatpush1.xpose.msra.mxu0 0.0
    %354 = vmatprep.subr.mxu0 0.0
    %355 = vmatpush1.xpose.msra.mxu0 0.0
    %356 = vmatprep.subr.mxu0 0.0
    %357 = vmatpush1.xpose.msra.mxu0 0.0
    %358 = vmatprep.subr.mxu0 0.0
    %359 = vmatpush1.xpose.msra.mxu0 0.0
    %360 = vmatprep.subr.mxu0 0.0
    %361 = vmatpush1.xpose.msra.mxu0 0.0
    %362 = vmatprep.subr.mxu0 0.0
    %363 = vmatpush1.xpose.msra.mxu0 0.0
    %364 = vmatprep.subr.mxu0 0.0
    %365 = vmatpush1.xpose.msra.mxu0 0.0
    %366 = vmatprep.subr.mxu0 0.0
    %367 = vmatpush1.xpose.msra.mxu0 0.0
    %368 = vmatprep.subr.mxu0 0.0
    %369 = vmatpush1.xpose.msra.mxu0 0.0
    %370 = vmatprep.mubr.f32.mxu0 %v291
    %371 = vmatmul.mubr.f32.gmra.mrb[0].mxu0 %v290
    %v372 = vpop.f32.mrb[0].mxu0
    %v373 = vadd.f32 0.0, %v372
    %v374 = vpop.f32.mrb[0].mxu0
    %375 = vmatprep.mubr.f32.mxu0 %v293
    %376 = vmatmul.mubr.f32.gmra.mrb[0].mxu0 %v292
    %v377 = vpop.f32.mrb[0].mxu0
    %v378 = vadd.f32 0.0, %v377
    %v379 = vpop.f32.mrb[0].mxu0
    %380 = vmatprep.mubr.f32.mxu0 %v295
    %381 = vmatmul.mubr.f32.gmra.mrb[0].mxu0 %v294
    %v382 = vpop.f32.mrb[0].mxu0
    %v383 = vadd.f32 0.0, %v382
    %v384 = vpop.f32.mrb[0].mxu0
    %385 = vmatprep.mubr.f32.mxu0 %v297
    %386 = vmatmul.mubr.f32.gmra.mrb[0].mxu0 %v296
    %v387 = vpop.f32.mrb[0].mxu0
    %v388 = vadd.f32 0.0, %v387
    %v389 = vpop.f32.mrb[0].mxu0
    %390 = vmatprep.mubr.f32.mxu0 %v299
    %391 = vmatmul.mubr.f32.gmra.mrb[0].mxu0 %v298
    %v392 = vpop.f32.mrb[0].mxu0
    %v393 = vadd.f32 0.0, %v392
    %v394 = vpop.f32.mrb[0].mxu0
    %395 = vmatprep.mubr.f32.mxu0 %v301
    %396 = vmatmul.mubr.f32.gmra.mrb[0].mxu0 %v300
    %v397 = vpop.f32.mrb[0].mxu0
    %v398 = vadd.f32 0.0, %v397
    %v399 = vpop.f32.mrb[0].mxu0
    %400 = vmatprep.mubr.f32.mxu0 %v303
    %401 = vmatmul.mubr.f32.gmra.mrb[0].mxu0 %v302
    %v402 = vpop.f32.mrb[0].mxu0
    %v403 = vadd.f32 0.0, %v402
    %v404 = vpop.f32.mrb[0].mxu0
    %405 = vmatprep.mubr.f32.mxu0 %v305
    %406 = vmatmul.mubr.f32.gmra.mrb[0].mxu0 %v304
    %v407 = vpop.f32.mrb[0].mxu0
    %v408 = vadd.f32 0.0, %v407
    %v409 = vpop.f32.mrb[0].mxu0
    %410 = vdwg.mxu0
    %v411 = vsub.f32 0.0, %v373
    %v412 = vsub.f32 0.0, %v378
    %v413 = vsub.f32 0.0, %v383
    %v414 = vsub.f32 0.0, %v388
    %v415 = vsub.f32 0.0, %v393
    %v416 = vsub.f32 0.0, %v398
    %v417 = vsub.f32 0.0, %v403
    %v418 = vsub.f32 0.0, %v408
    %v419 = vmul.f32 %v411, 1.442695
    %v420 = vpow.pop %v419
    %v421 = vmul.f32 %v412, 1.442695
    %v422 = vpow.pop %v421
    %v423 = vmul.f32 %v413, 1.442695
    %v424 = vpow.pop %v423
    %v425 = vmul.f32 %v414, 1.442695
    %v426 = vpow.pop %v425
    %v427 = vmul.f32 %v415, 1.442695
    %v428 = vpow.pop %v427
    %v429 = vmul.f32 %v416, 1.442695
    %v430 = vpow.pop %v429
    %v431 = vmul.f32 %v417, 1.442695
    %v432 = vpow.pop %v431
    %v433 = vmul.f32 %v418, 1.442695
    %v434 = vpow.pop %v433
    %vm435 = vcmask 130048
    %v436 = vsel %vm435, %v420, 0.0
    %v437 = vsel %vm435, %v422, 0.0
    %v438 = vadd.f32 %v436, %v437
    %v439 = vsel %vm435, %v424, 0.0
    %v440 = vadd.f32 %v438, %v439
    %v441 = vsel %vm435, %v426, 0.0
    %v442 = vadd.f32 %v440, %v441
    %v443 = vsel %vm435, %v428, 0.0
    %v444 = vadd.f32 %v442, %v443
    %v445 = vsel %vm435, %v430, 0.0
    %v446 = vadd.f32 %v444, %v445
    %v447 = vsel %vm435, %v432, 0.0
    %v448 = vadd.f32 %v446, %v447
    %v449 = vsel %vm435, %v434, 0.0
    %v450 = vadd.f32 %v448, %v449
    %v451 = vsub.f32 %v450, 1.0
    %452 = vst.msk [vmem:[#allocation8] sm:$0xff] %vm67, %v54
    %454 = vrot.lane.b32.xlu0 %v451, 32
    %v455 = vpop.permute.xlu0 %454
    %vm457 = vcmask 392448
    %458 = vst.msk [vmem:[#allocation8] sm:$0xff] %vm457, %v455
    // Predicated region
    $region26: #{tpu_custom_call.1} parent=1 // pred_check
      _
    $region27: #{tpu_custom_call.1} parent=1 // pred_check_branch
      %460 = sbr.rel (0) target = $region29
    $region28: #{tpu_custom_call.1} parent=1 // pred_region
      %s462 = ssub.s32 128, 128
      %463 = vsyncadd [#allocation4], %s462
      %s465 = sshll.u32 [#allocation8], 4
      %s466 = int_to_ptr.vmem [resolvable:$true] %s465
      %468 = dma.vmem_to_hbm [thread:$0]  %s466, 128, %s3, [#allocation4]
    $region29: #{tpu_custom_call.1} parent=1 // pred_fallthru
      _
    // Predicated region
    $region30: #{tpu_custom_call.1} parent=1 // pred_check
      _
    $region31: #{tpu_custom_call.1} parent=1 // pred_check_branch
      %470 = sbr.rel (0) target = $region33
    $region32: #{tpu_custom_call.1} parent=1 // pred_region
      %471 = dma.done [#allocation4], 128
    $region33: #{tpu_custom_call.1} parent=1 // pred_fallthru
      _
    %472 = vsyncpa [#allocation3], 1
    %473 = vsyncpa [#allocation6], 1
    %474 = vsyncpa [#allocation4], 1

</llo_original>
